<compile_context>
chip_gen: v7x
topology: tpu7x:2x2x1
jax: 0.10.0
libtpu: 0.0.40
codegen_flags: <defaults>
</compile_context>

<pallas_src>
import jax
import jax.numpy as jnp
from jax.experimental import pallas as pl
from jax.experimental.pallas import tpu as pltpu

IGNORE = 100                      # CrossEntropyLoss(ignore_index=100) in the reference
TSUB = 64                         # sublane-groups per tiled grid step
ROWS_PER_TILE = TSUB * 128        # 8192 rows / step for the tiled path
SINGLE_ROW_MULT = 8 * 128         # minimal (8,128)-aligned padding for the fast path
SINGLE_MAX_BYTES = 6 * 1024 * 1024  # fast-path VMEM budget (safe on v5e's 16 MiB scoped)
OUT_SHAPE = (8, 128)              # lane-aligned scalar output slab


# --------------------------- shared per-head math ---------------------------
def _head_stats(logits, lbl):
    """logits: (C, S, 128) f32, lbl: (S, 128) i32.

    Returns per-element (loss, count, correct) slabs, each (S, 128) f32.
    NOTE: labels are assumed to lie in {0..C-1, IGNORE}; ties in argmax keep
    the first maximal class (matches jnp.argmax).
    """
    c = logits.shape[0]
    x = [logits[k] for k in range(c)]               # C dense (S, 128) slabs

    m = x[0]
    for k in range(1, c):
        m = jnp.maximum(m, x[k])

    if c == 2:
        # lse (relative to m) with a single exp + single log.
        mn = jnp.minimum(x[0], x[1])
        lse = jnp.log(1.0 + jnp.exp(mn - m))
    else:
        s = jnp.exp(x[0] - m)
        for k in range(1, c):
            s = s + jnp.exp(x[k] - m)
        lse = jnp.log(s)

    xl = x[0]
    best_v = x[0]
    best_i = jnp.zeros_like(lbl)
    for k in range(1, c):
        xl = jnp.where(lbl == k, x[k], xl)
        better = x[k] > best_v                       # strict > keeps the first max
        best_v = jnp.where(better, x[k], best_v)
        best_i = jnp.where(better, k, best_i)

    valid = lbl != IGNORE
    correct = jnp.logical_and(best_i == lbl, valid)
    neg_logp = lse + m - xl                          # -log softmax[label]

    zero = jnp.zeros_like(neg_logp)
    one = jnp.ones_like(neg_logp)
    return (jnp.where(valid, neg_logp, zero),
            jnp.where(valid, one, zero),
            jnp.where(correct, one, zero))


# ------------------------------- kernels -------------------------------------
def _sdmg_single_kernel(node_logits_ref, node_labels_ref,
                        edge_logits_ref, edge_labels_ref, out_ref):
    """Fast path: everything resident in VMEM, single invocation, no scratch."""
    n_loss, n_cnt, n_corr = _head_stats(
        node_logits_ref[...].astype(jnp.float32), node_labels_ref[...])
    e_loss, e_cnt, e_corr = _head_stats(
        edge_logits_ref[...].astype(jnp.float32), edge_labels_ref[...])

    rows = [jnp.sum(a, axis=0, keepdims=True)        # (1, 128) per stat
            for a in (n_loss, n_cnt, n_corr, e_loss, e_cnt, e_corr)]
    rows.append(jnp.zeros_like(rows[0]))
    rows.append(jnp.zeros_like(rows[0]))
    out_ref[...] = jnp.concatenate(rows, axis=0)     # single (8, 128) store


def _sdmg_tiled_kernel(meta_ref,
                       node_logits_ref, node_labels_ref,
                       edge_logits_ref, edge_labels_ref,
                       out_ref, acc_ref):
    """acc_ref rows: 0..2 = node (loss_sum, count, correct), 3..5 = edge."""
    i = pl.program_id(0)

    @pl.when(i == 0)
    def _init():
        acc_ref[...] = jnp.zeros_like(acc_ref)

    # meta_ref = [last_node_tile, last_edge_tile]; steps past a head's last tile
    # are skipped entirely (index_map clamps so no redundant DMA either).
    @pl.when(i <= meta_ref[0])
    def _node():
        loss, cnt, corr = _head_stats(
            node_logits_ref[...].astype(jnp.float32), node_labels_ref[...])
        acc_ref[0] += loss
        acc_ref[1] += cnt
        acc_ref[2] += corr

    @pl.when(i <= meta_ref[1])
    def _edge():
        loss, cnt, corr = _head_stats(
            edge_logits_ref[...].astype(jnp.float32), edge_labels_ref[...])
        acc_ref[3] += loss
        acc_ref[4] += cnt
        acc_ref[5] += corr

    @pl.when(i == pl.num_programs(0) - 1)
    def _finalize():
        # reduce the sublane-group axis; lane reduction happens host-side.
        out_ref[...] = jnp.sum(acc_ref[...], axis=1)   # (8, 128)


# ----------------------------- host-side wrapper ------------------------------
def _prep_head(preds, labels, row_mult):
    """(N, C) preds -> lane/sublane-dense (C, n_sub, 128) in native dtype;
    labels -> (n_sub, 128) i32 with IGNORE in the padded tail."""
    preds = jnp.asarray(preds)                        # keep native dtype (bf16 ok)
    labels = jnp.asarray(labels, jnp.int32)
    n, c = preds.shape
    n_tiles = max(1, -(-n // row_mult))
    n_pad = n_tiles * row_mult
    preds_t = jnp.pad(preds.T, ((0, 0), (0, n_pad - n)))
    labels_p = jnp.pad(labels, (0, n_pad - n), constant_values=IGNORE)
    n_sub = n_pad // 128
    return preds_t.reshape(c, n_sub, 128), labels_p.reshape(n_sub, 128), n_tiles


def _single_call(node_preds, node_labels, edge_preds, edge_labels):
    node_t, node_lab, _ = _prep_head(node_preds, node_labels, SINGLE_ROW_MULT)
    edge_t, edge_lab, _ = _prep_head(edge_preds, edge_labels, SINGLE_ROW_MULT)
    return pl.pallas_call(
        _sdmg_single_kernel,
        out_shape=jax.ShapeDtypeStruct(OUT_SHAPE, jnp.float32),
    )(node_t, node_lab, edge_t, edge_lab)


def _tiled_call(node_preds, node_labels, edge_preds, edge_labels):
    node_t, node_lab, node_tiles = _prep_head(node_preds, node_labels, ROWS_PER_TILE)
    edge_t, edge_lab, edge_tiles = _prep_head(edge_preds, edge_labels, ROWS_PER_TILE)
    c_n = node_t.shape[0]
    c_e = edge_t.shape[0]
    n_steps = max(node_tiles, edge_tiles)
    meta = jnp.array([node_tiles - 1, edge_tiles - 1], jnp.int32)

    def node_logit_map(i, meta_ref):
        return (0, jnp.minimum(i, meta_ref[0]), 0)

    def node_label_map(i, meta_ref):
        return (jnp.minimum(i, meta_ref[0]), 0)

    def edge_logit_map(i, meta_ref):
        return (0, jnp.minimum(i, meta_ref[1]), 0)

    def edge_label_map(i, meta_ref):
        return (jnp.minimum(i, meta_ref[1]), 0)

    grid_spec = pltpu.PrefetchScalarGridSpec(
        num_scalar_prefetch=1,
        grid=(n_steps,),
        in_specs=[
            pl.BlockSpec((c_n, TSUB, 128), node_logit_map),
            pl.BlockSpec((TSUB, 128), node_label_map),
            pl.BlockSpec((c_e, TSUB, 128), edge_logit_map),
            pl.BlockSpec((TSUB, 128), edge_label_map),
        ],
        out_specs=pl.BlockSpec(OUT_SHAPE, lambda i, meta_ref: (0, 0)),
        scratch_shapes=[pltpu.VMEM((8, TSUB, 128), jnp.float32)],
    )

    return pl.pallas_call(
        _sdmg_tiled_kernel,
        out_shape=jax.ShapeDtypeStruct(OUT_SHAPE, jnp.float32),
        grid_spec=grid_spec,
        compiler_params=pltpu.CompilerParams(dimension_semantics=("arbitrary",)),
    )(meta, node_t, node_lab, edge_t, edge_lab)


def _ce_acc_fused(node_preds, node_labels, edge_preds, edge_labels,
                  single_max_bytes=SINGLE_MAX_BYTES):
    """Returns (node_loss_sum, node_cnt, node_correct, edge_loss_sum, edge_cnt, edge_correct)."""
    def padded_bytes(preds):
        preds = jnp.asarray(preds)
        n, c = preds.shape
        rows = max(1, -(-n // SINGLE_ROW_MULT)) * SINGLE_ROW_MULT
        return rows * (c * jnp.dtype(preds.dtype).itemsize + 4)

    footprint = padded_bytes(node_preds) + padded_bytes(edge_preds)
    if footprint <= single_max_bytes:
        out = _single_call(node_preds, node_labels, edge_preds, edge_labels)
    else:
        out = _tiled_call(node_preds, node_labels, edge_preds, edge_labels)

    col = jnp.sum(out, axis=-1)                       # lane reduction host-side
    return col[0], col[1], col[2], col[3], col[4], col[5]


def sdmg_loss(node_preds, edge_preds, gts, node_weight=1.0, edge_weight=1.0):
    """Mirrors SDMGLoss.forward.

    gts: list of int arrays, each (num_boxes_i, 1 + num_edges_per_box_i):
         column 0 = node label, columns 1: = edge labels (100 = ignore).
    """
    node_gts = jnp.concatenate([jnp.asarray(g)[:, 0] for g in gts]).astype(jnp.int32)
    edge_gts = jnp.concatenate(
        [jnp.asarray(g)[:, 1:].reshape(-1) for g in gts]).astype(jnp.int32)

    (loss_n_sum, cnt_n, corr_n,
     loss_e_sum, cnt_e, corr_e) = _ce_acc_fused(node_preds, node_gts,
                                                edge_preds, edge_gts)

    safe_n = jnp.maximum(cnt_n, 1.0)
    safe_e = jnp.maximum(cnt_e, 1.0)
    # NOTE: torch CE with every target ignored yields NaN; we guard to 0.0 here.
    n_loss_raw = jnp.where(cnt_n > 0, loss_n_sum / safe_n, 0.0)
    e_loss_raw = jnp.where(cnt_e > 0, loss_e_sum / safe_e, 0.0)
    acc_node = jnp.where(cnt_n > 0, corr_n / safe_n * 100.0, 0.0)
    acc_edge = jnp.where(cnt_e > 0, corr_e / safe_e * 100.0, 0.0)

    n_loss = node_weight * n_loss_raw
    e_loss = edge_weight * e_loss_raw
    return dict(
        loss_all=n_loss + e_loss,
        loss_node=n_loss,
        loss_edge=e_loss,
        acc_node=acc_node,
        acc_edge=acc_edge,
    )


# ----------------------------- pure-JAX reference -----------------------------
def _reference_sums(preds, labels):
    preds = jnp.asarray(preds, jnp.float32)
    labels = jnp.asarray(labels, jnp.int32)
    valid = labels != IGNORE
    logp = jax.nn.log_softmax(preds, axis=-1)
    idx = jnp.clip(labels, 0, preds.shape[1] - 1)
    picked = jnp.take_along_axis(logp, idx[:, None], axis=1)[:, 0]
    loss_sum = jnp.sum(jnp.where(valid, -picked, 0.0))
    cnt = jnp.sum(valid.astype(jnp.float32))
    pred_lab = jnp.argmax(preds, axis=-1)
    corr = jnp.sum(jnp.where(valid & (pred_lab == labels), 1.0, 0.0))
    return loss_sum, cnt, corr


def _close(a, b, tol=2e-3):
    a = float(a)
    b = float(b)
    return abs(a - b) <= tol * max(1.0, abs(b))


if __name__ == "__main__":
    key = jax.random.PRNGKey(0)
    k_gt0, k_gt1, k_np, k_ep, k_big = jax.random.split(key, 5)

    # ---- test 1: module-shaped example (2 images, 4 boxes each) -> fast path ----
    NUM_BOXES = 4
    NODE_CLASSES = 4
    EDGE_CLASSES = 2

    gts = []
    for kk in (k_gt0, k_gt1):
        ka, kb = jax.random.split(kk, 2)
        node_lab = jax.random.randint(ka, (NUM_BOXES,), 0, NODE_CLASSES)
        edge_lab = jax.random.randint(kb, (NUM_BOXES, NUM_BOXES), 0, EDGE_CLASSES)
        node_lab = node_lab.at[0].set(IGNORE)          # some ignored node labels
        edge_lab = edge_lab.at[0, 0].set(IGNORE)       # some ignored edge labels
        gt = jnp.concatenate([node_lab[:, None], edge_lab], axis=1).astype(jnp.int32)
        gts.append(gt)

    total_nodes = 2 * NUM_BOXES                        # 8
    total_edges = 2 * NUM_BOXES * NUM_BOXES            # 32
    node_preds = jax.random.normal(k_np, (total_nodes, NODE_CLASSES), jnp.float32)
    edge_preds = jax.random.normal(k_ep, (total_edges, EDGE_CLASSES), jnp.float32)

    res = sdmg_loss(node_preds, edge_preds, gts, node_weight=1.0, edge_weight=1.0)
    jax.block_until_ready(res)

    node_gts = jnp.concatenate([g[:, 0] for g in gts]).astype(jnp.int32)
    edge_gts = jnp.concatenate([g[:, 1:].reshape(-1) for g in gts]).astype(jnp.int32)
    nls, ncn, ncr = _reference_sums(node_preds, node_gts)
    els, ecn, ecr = _reference_sums(edge_preds, edge_gts)
    ref_ln = nls / ncn
    ref_le = els / ecn
    assert _close(res["loss_node"], ref_ln)
    assert _close(res["loss_edge"], ref_le)
    assert _close(res["loss_all"], ref_ln + ref_le)
    assert _close(res["acc_node"], ncr / ncn * 100.0)
    assert _close(res["acc_edge"], ecr / ecn * 100.0)

    # ---- test 2: tiled path with unequal tile counts (exercises pl.when + clamping) ----
    kb1, kb2, kb3, kb4, kb5, kb6 = jax.random.split(k_big, 6)
    n_node2, n_edge2 = 9000, 20000                     # 2 node tiles vs 3 edge tiles
    node_preds2 = jax.random.normal(kb1, (n_node2, NODE_CLASSES), jnp.float32)
    edge_preds2 = jax.random.normal(kb2, (n_edge2, EDGE_CLASSES), jnp.float32)
    node_lab2 = jax.random.randint(kb3, (n_node2,), 0, NODE_CLASSES)
    edge_lab2 = jax.random.randint(kb4, (n_edge2,), 0, EDGE_CLASSES)
    node_lab2 = jnp.where(jax.random.uniform(kb5, (n_node2,)) < 0.1, IGNORE, node_lab2)
    edge_lab2 = jnp.where(jax.random.uniform(kb6, (n_edge2,)) < 0.1, IGNORE, edge_lab2)

    got = _ce_acc_fused(node_preds2, node_lab2, edge_preds2, edge_lab2,
                        single_max_bytes=0)            # force the tiled path
    jax.block_until_ready(got)
    ref = _reference_sums(node_preds2, node_lab2) + _reference_sums(edge_preds2, edge_lab2)
    for g, r in zip(got, ref):
        assert _close(g, r), (float(g), float(r))

    print("KERNEL_OK")
</pallas_src>

<mosaic_0001>
module attributes {stable_mosaic.version = 11 : i64} {
  func.func @_sdmg_single_kernel(%arg0: memref<4x8x128xf32, #tpu.memory_space<vmem>>, %arg1: memref<8x128xi32, #tpu.memory_space<vmem>>, %arg2: memref<2x8x128xf32, #tpu.memory_space<vmem>>, %arg3: memref<8x128xi32, #tpu.memory_space<vmem>>, %arg4: memref<8x128xf32, #tpu.memory_space<vmem>>) attributes {dimension_semantics = [], scalar_prefetch = 0 : i64, scratch_operands = 0 : i64, tpu.core_type = #tpu.core_type<tc>} {
    %c0 = arith.constant 0 : index
    %c0_0 = arith.constant 0 : index
    %c0_1 = arith.constant 0 : index
    %0 = vector.load %arg0[%c0, %c0_0, %c0_1] : memref<4x8x128xf32, #tpu.memory_space<vmem>>, vector<4x8x128xf32>
    %c0_2 = arith.constant 0 : index
    %c0_3 = arith.constant 0 : index
    %1 = vector.load %arg1[%c0_2, %c0_3] : memref<8x128xi32, #tpu.memory_space<vmem>>, vector<8x128xi32>
    %2 = vector.extract_strided_slice %0 {offsets = [0, 0, 0], sizes = [1, 8, 128], strides = [1, 1, 1]} : vector<4x8x128xf32> to vector<1x8x128xf32>
    %3 = vector.shape_cast %2 : vector<1x8x128xf32> to vector<8x128xf32>
    %4 = vector.extract_strided_slice %0 {offsets = [1, 0, 0], sizes = [1, 8, 128], strides = [1, 1, 1]} : vector<4x8x128xf32> to vector<1x8x128xf32>
    %5 = vector.shape_cast %4 : vector<1x8x128xf32> to vector<8x128xf32>
    %6 = vector.extract_strided_slice %0 {offsets = [2, 0, 0], sizes = [1, 8, 128], strides = [1, 1, 1]} : vector<4x8x128xf32> to vector<1x8x128xf32>
    %7 = vector.shape_cast %6 : vector<1x8x128xf32> to vector<8x128xf32>
    %8 = vector.extract_strided_slice %0 {offsets = [3, 0, 0], sizes = [1, 8, 128], strides = [1, 1, 1]} : vector<4x8x128xf32> to vector<1x8x128xf32>
    %9 = vector.shape_cast %8 : vector<1x8x128xf32> to vector<8x128xf32>
    %10 = arith.maximumf %3, %5 : vector<8x128xf32>
    %11 = arith.maximumf %10, %7 : vector<8x128xf32>
    %12 = arith.maximumf %11, %9 : vector<8x128xf32>
    %13 = arith.subf %3, %12 : vector<8x128xf32>
    %14 = math.exp %13 : vector<8x128xf32>
    %15 = arith.subf %5, %12 : vector<8x128xf32>
    %16 = math.exp %15 : vector<8x128xf32>
    %17 = arith.addf %14, %16 : vector<8x128xf32>
    %18 = arith.subf %7, %12 : vector<8x128xf32>
    %19 = math.exp %18 : vector<8x128xf32>
    %20 = arith.addf %17, %19 : vector<8x128xf32>
    %21 = arith.subf %9, %12 : vector<8x128xf32>
    %22 = math.exp %21 : vector<8x128xf32>
    %23 = arith.addf %20, %22 : vector<8x128xf32>
    %24 = math.log %23 : vector<8x128xf32>
    %c0_i32 = arith.constant 0 : i32
    %25 = vector.broadcast %c0_i32 : i32 to vector<8x128xi32>
    %c1_i32 = arith.constant 1 : i32
    %26 = vector.broadcast %c1_i32 : i32 to vector<8x128xi32>
    %27 = arith.cmpi eq, %1, %26 : vector<8x128xi32>
    %28 = arith.select %27, %5, %3 : vector<8x128xi1>, vector<8x128xf32>
    %29 = arith.cmpf ogt, %5, %3 : vector<8x128xf32>
    %30 = arith.select %29, %5, %3 : vector<8x128xi1>, vector<8x128xf32>
    %c1_i32_4 = arith.constant 1 : i32
    %31 = vector.broadcast %c1_i32_4 : i32 to vector<8x128xi32>
    %32 = arith.select %29, %31, %25 : vector<8x128xi1>, vector<8x128xi32>
    %c2_i32 = arith.constant 2 : i32
    %33 = vector.broadcast %c2_i32 : i32 to vector<8x128xi32>
    %34 = arith.cmpi eq, %1, %33 : vector<8x128xi32>
    %35 = arith.select %34, %7, %28 : vector<8x128xi1>, vector<8x128xf32>
    %36 = arith.cmpf ogt, %7, %30 : vector<8x128xf32>
    %37 = arith.select %36, %7, %30 : vector<8x128xi1>, vector<8x128xf32>
    %c2_i32_5 = arith.constant 2 : i32
    %38 = vector.broadcast %c2_i32_5 : i32 to vector<8x128xi32>
    %39 = arith.select %36, %38, %32 : vector<8x128xi1>, vector<8x128xi32>
    %c3_i32 = arith.constant 3 : i32
    %40 = vector.broadcast %c3_i32 : i32 to vector<8x128xi32>
    %41 = arith.cmpi eq, %1, %40 : vector<8x128xi32>
    %42 = arith.select %41, %9, %35 : vector<8x128xi1>, vector<8x128xf32>
    %43 = arith.cmpf ogt, %9, %37 : vector<8x128xf32>
    %c3_i32_6 = arith.constant 3 : i32
    %44 = vector.broadcast %c3_i32_6 : i32 to vector<8x128xi32>
    %45 = arith.select %43, %44, %39 : vector<8x128xi1>, vector<8x128xi32>
    %c100_i32 = arith.constant 100 : i32
    %46 = vector.broadcast %c100_i32 : i32 to vector<8x128xi32>
    %47 = arith.cmpi ne, %1, %46 : vector<8x128xi32>
    %48 = arith.cmpi eq, %45, %1 : vector<8x128xi32>
    %49 = arith.andi %48, %47 : vector<8x128xi1>
    %50 = arith.addf %24, %12 : vector<8x128xf32>
    %51 = arith.subf %50, %42 : vector<8x128xf32>
    %cst = arith.constant 0.000000e+00 : f32
    %52 = vector.broadcast %cst : f32 to vector<8x128xf32>
    %cst_7 = arith.constant 1.000000e+00 : f32
    %53 = vector.broadcast %cst_7 : f32 to vector<8x128xf32>
    %54 = arith.select %47, %51, %52 : vector<8x128xi1>, vector<8x128xf32>
    %55 = arith.select %47, %53, %52 : vector<8x128xi1>, vector<8x128xf32>
    %56 = arith.select %49, %53, %52 : vector<8x128xi1>, vector<8x128xf32>
    %c0_8 = arith.constant 0 : index
    %c0_9 = arith.constant 0 : index
    %c0_10 = arith.constant 0 : index
    %57 = vector.load %arg2[%c0_8, %c0_9, %c0_10] : memref<2x8x128xf32, #tpu.memory_space<vmem>>, vector<2x8x128xf32>
    %c0_11 = arith.constant 0 : index
    %c0_12 = arith.constant 0 : index
    %58 = vector.load %arg3[%c0_11, %c0_12] : memref<8x128xi32, #tpu.memory_space<vmem>>, vector<8x128xi32>
    %59 = vector.extract_strided_slice %57 {offsets = [0, 0, 0], sizes = [1, 8, 128], strides = [1, 1, 1]} : vector<2x8x128xf32> to vector<1x8x128xf32>
    %60 = vector.shape_cast %59 : vector<1x8x128xf32> to vector<8x128xf32>
    %61 = vector.extract_strided_slice %57 {offsets = [1, 0, 0], sizes = [1, 8, 128], strides = [1, 1, 1]} : vector<2x8x128xf32> to vector<1x8x128xf32>
    %62 = vector.shape_cast %61 : vector<1x8x128xf32> to vector<8x128xf32>
    %63 = arith.maximumf %60, %62 : vector<8x128xf32>
    %64 = arith.minimumf %60, %62 : vector<8x128xf32>
    %65 = arith.subf %64, %63 : vector<8x128xf32>
    %66 = math.exp %65 : vector<8x128xf32>
    %cst_13 = arith.constant 1.000000e+00 : f32
    %67 = vector.broadcast %cst_13 : f32 to vector<8x128xf32>
    %68 = arith.addf %67, %66 : vector<8x128xf32>
    %69 = math.log %68 : vector<8x128xf32>
    %c0_i32_14 = arith.constant 0 : i32
    %70 = vector.broadcast %c0_i32_14 : i32 to vector<8x128xi32>
    %c1_i32_15 = arith.constant 1 : i32
    %71 = vector.broadcast %c1_i32_15 : i32 to vector<8x128xi32>
    %72 = arith.cmpi eq, %58, %71 : vector<8x128xi32>
    %73 = arith.select %72, %62, %60 : vector<8x128xi1>, vector<8x128xf32>
    %74 = arith.cmpf ogt, %62, %60 : vector<8x128xf32>
    %c1_i32_16 = arith.constant 1 : i32
    %75 = vector.broadcast %c1_i32_16 : i32 to vector<8x128xi32>
    %76 = arith.select %74, %75, %70 : vector<8x128xi1>, vector<8x128xi32>
    %c100_i32_17 = arith.constant 100 : i32
    %77 = vector.broadcast %c100_i32_17 : i32 to vector<8x128xi32>
    %78 = arith.cmpi ne, %58, %77 : vector<8x128xi32>
    %79 = arith.cmpi eq, %76, %58 : vector<8x128xi32>
    %80 = arith.andi %79, %78 : vector<8x128xi1>
    %81 = arith.addf %69, %63 : vector<8x128xf32>
    %82 = arith.subf %81, %73 : vector<8x128xf32>
    %cst_18 = arith.constant 0.000000e+00 : f32
    %83 = vector.broadcast %cst_18 : f32 to vector<8x128xf32>
    %cst_19 = arith.constant 1.000000e+00 : f32
    %84 = vector.broadcast %cst_19 : f32 to vector<8x128xf32>
    %85 = arith.select %78, %82, %83 : vector<8x128xi1>, vector<8x128xf32>
    %86 = arith.select %78, %84, %83 : vector<8x128xi1>, vector<8x128xf32>
    %87 = arith.select %80, %84, %83 : vector<8x128xi1>, vector<8x128xf32>
    %cst_20 = arith.constant dense<0.000000e+00> : vector<128xf32>
    %88 = vector.multi_reduction <add>, %54, %cst_20 [0] : vector<8x128xf32> to vector<128xf32>
    %89 = vector.shape_cast %88 : vector<128xf32> to vector<1x128xf32>
    %cst_21 = arith.constant dense<0.000000e+00> : vector<128xf32>
    %90 = vector.multi_reduction <add>, %55, %cst_21 [0] : vector<8x128xf32> to vector<128xf32>
    %91 = vector.shape_cast %90 : vector<128xf32> to vector<1x128xf32>
    %cst_22 = arith.constant dense<0.000000e+00> : vector<128xf32>
    %92 = vector.multi_reduction <add>, %56, %cst_22 [0] : vector<8x128xf32> to vector<128xf32>
    %93 = vector.shape_cast %92 : vector<128xf32> to vector<1x128xf32>
    %cst_23 = arith.constant dense<0.000000e+00> : vector<128xf32>
    %94 = vector.multi_reduction <add>, %85, %cst_23 [0] : vector<8x128xf32> to vector<128xf32>
    %95 = vector.shape_cast %94 : vector<128xf32> to vector<1x128xf32>
    %cst_24 = arith.constant dense<0.000000e+00> : vector<128xf32>
    %96 = vector.multi_reduction <add>, %86, %cst_24 [0] : vector<8x128xf32> to vector<128xf32>
    %97 = vector.shape_cast %96 : vector<128xf32> to vector<1x128xf32>
    %cst_25 = arith.constant dense<0.000000e+00> : vector<128xf32>
    %98 = vector.multi_reduction <add>, %87, %cst_25 [0] : vector<8x128xf32> to vector<128xf32>
    %99 = vector.shape_cast %98 : vector<128xf32> to vector<1x128xf32>
    %cst_26 = arith.constant 0.000000e+00 : f32
    %100 = vector.broadcast %cst_26 : f32 to vector<1x128xf32>
    %cst_27 = arith.constant 0.000000e+00 : f32
    %101 = vector.broadcast %cst_27 : f32 to vector<1x128xf32>
    %102 = tpu.concatenate %89, %91, %93, %95, %97, %99, %100, %101 in 0 : vector<1x128xf32>, vector<1x128xf32>, vector<1x128xf32>, vector<1x128xf32>, vector<1x128xf32>, vector<1x128xf32>, vector<1x128xf32>, vector<1x128xf32> -> vector<8x128xf32>
    %c0_28 = arith.constant 0 : index
    %c0_29 = arith.constant 0 : index
    %103 = vector.load %arg4[%c0_28, %c0_29] : memref<8x128xf32, #tpu.memory_space<vmem>>, vector<8x128xf32>
    tpu.vector_store %arg4[%c0_28, %c0_29], %102 {strides = array<i32>} : memref<8x128xf32, #tpu.memory_space<vmem>>, vector<8x128xf32>,
    return
  }
}

</mosaic_0001>

<llo_original>
// kernel: tpu_custom_call.1
$region0: #{tpu_custom_call.1}
  #allocation0 [shape = 'u32[]', space=smem, size = 0x4, offset = 0x4, fixed_abs, tag = 'smem constant byte address 0x4 - core index']
  #allocation1 [shape = 'u32[144,128]{1,0:T(1,128)}', space=vmem, size = 0x12000, scoped, tag = 'internal scratch']
  %s0 = inlined_call_operand.hbm [shape: f32[4,8,128], index: 0, kind: input, shape index: {}]
  %s1 = inlined_call_operand.hbm [shape: s32[8,128], index: 1, kind: input, shape index: {}]
  %s2 = inlined_call_operand.hbm [shape: f32[2,8,128], index: 2, kind: input, shape index: {}]
  %s3 = inlined_call_operand.vmem [shape: s32[8,128], index: 3, kind: input, shape index: {}]
  %s4 = inlined_call_operand.hbm [shape: f32[8,128], index: 4, kind: output, shape index: {}]
  %s5 = sld [smem:[#allocation0]]
  $region38: #{tpu_custom_call.1} parent=0
    _
  %s7 = ssub.s32 1, %s5
  %s8 = scalar_select 0, %s7, %s5
  $region1: #{tpu_custom_call.1} parent=0
    #allocation2 [shape = 'u8[16384]{0}', space=vmem, size = 0x4000, scoped, tag = 'input window, operand 0, single buffered']
    #allocation3 [shape = 's32[1]{0}', space=sflag, size = 0x4, scoped, tag = 'scoped memory for tpu_custom_call.1']
    #allocation4 [shape = 's32[1]{0}', space=sflag, size = 0x4, scoped, tag = 'scoped memory for tpu_custom_call.1']
    #allocation5 [shape = 'u8[4096]{0}', space=vmem, size = 0x1000, scoped, tag = 'input window, operand 1, single buffered']
    #allocation6 [shape = 's32[1]{0}', space=sflag, size = 0x4, scoped, tag = 'scoped memory for tpu_custom_call.1']
    #allocation7 [shape = 'u8[8192]{0}', space=vmem, size = 0x2000, scoped, tag = 'input window, operand 2, single buffered']
    #allocation8 [shape = 'u8[4096]{0}', space=vmem, size = 0x1000, scoped, tag = 'output window, operand 0, single buffered']
    %9 = vsyncpa [#allocation3], 0
    %10 = vsyncpa [#allocation6], 0
    %11 = vsyncpa [#allocation4], 0
    // Predicated region
    $region2: #{tpu_custom_call.1} parent=1 // pred_check
      _
    $region3: #{tpu_custom_call.1} parent=1 // pred_check_branch
      %13 = sbr.rel (0) target = $region5
    $region4: #{tpu_custom_call.1} parent=1 // pred_region
      %s15 = ssub.s32 512, 512
      %16 = vsyncadd [#allocation3], %s15
      %s17 = sshll.u32 [#allocation2], 4
      %s18 = int_to_ptr.vmem [resolvable:$true] %s17
      %23 = dma.hbm_to_vmem [thread:$0]  %s0, 512, %s18, [#allocation3], 128, 128, 8
    $region5: #{tpu_custom_call.1} parent=1 // pred_fallthru
      _
    // Predicated region
    $region6: #{tpu_custom_call.1} parent=1 // pred_check
      _
    $region7: #{tpu_custom_call.1} parent=1 // pred_check_branch
      %25 = sbr.rel (0) target = $region9
    $region8: #{tpu_custom_call.1} parent=1 // pred_region
      %s27 = ssub.s32 128, 128
      %28 = vsyncadd [#allocation6], %s27
      %s30 = sshll.u32 [#allocation5], 4
      %s31 = int_to_ptr.vmem [resolvable:$true] %s30
      %33 = dma.hbm_to_vmem [thread:$0]  %s1, 128, %s31, [#allocation6]
    $region9: #{tpu_custom_call.1} parent=1 // pred_fallthru
      _
    // Predicated region
    $region10: #{tpu_custom_call.1} parent=1 // pred_check
      _
    $region11: #{tpu_custom_call.1} parent=1 // pred_check_branch
      %35 = sbr.rel (0) target = $region13
    $region12: #{tpu_custom_call.1} parent=1 // pred_region
      %s37 = ssub.s32 256, 256
      %38 = vsyncadd [#allocation6], %s37
      %s39 = sshll.u32 [#allocation7], 4
      %s40 = int_to_ptr.vmem [resolvable:$true] %s39
      %45 = dma.hbm_to_vmem [thread:$0]  %s2, 256, %s40, [#allocation6], 128, 128, 8
    $region13: #{tpu_custom_call.1} parent=1 // pred_fallthru
      _
    // Predicated region
    $region14: #{tpu_custom_call.1} parent=1 // pred_check
      _
    $region15: #{tpu_custom_call.1} parent=1 // pred_check_branch
      %47 = sbr.rel (0) target = $region17
    $region16: #{tpu_custom_call.1} parent=1 // pred_region
      _
    $region17: #{tpu_custom_call.1} parent=1 // pred_fallthru
      _
    // Predicated region
    $region18: #{tpu_custom_call.1} parent=1 // pred_check
      _
    $region19: #{tpu_custom_call.1} parent=1 // pred_check_branch
      %49 = sbr.rel (0) target = $region21
    $region20: #{tpu_custom_call.1} parent=1 // pred_region
      %50 = dma.done [#allocation3], 512
    $region21: #{tpu_custom_call.1} parent=1 // pred_fallthru
      _
    // Predicated region
    $region22: #{tpu_custom_call.1} parent=1 // pred_check
      _
    $region23: #{tpu_custom_call.1} parent=1 // pred_check_branch
      %52 = sbr.rel (0) target = $region25
    $region24: #{tpu_custom_call.1} parent=1 // pred_region
      %53 = dma.done [#allocation6], 128
    $region25: #{tpu_custom_call.1} parent=1 // pred_fallthru
      _
    // Predicated region
    $region26: #{tpu_custom_call.1} parent=1 // pred_check
      _
    $region27: #{tpu_custom_call.1} parent=1 // pred_check_branch
      %55 = sbr.rel (0) target = $region29
    $region28: #{tpu_custom_call.1} parent=1 // pred_region
      %56 = dma.done [#allocation6], 256
    $region29: #{tpu_custom_call.1} parent=1 // pred_fallthru
      _
    %v57 = vld [vmem:[#allocation2] sm:$0xff]
    %v58 = vld [vmem:[#allocation2 + $0x8] sm:$0xff]
    %v59 = vld [vmem:[#allocation2 + $0x10] sm:$0xff]
    %v60 = vld [vmem:[#allocation2 + $0x18] sm:$0xff]
    %v61 = vld [vmem:[#allocation5] sm:$0xff]
    %v62 = vmax.f32 %v57, %v58
    %v63 = vmax.f32 %v62, %v59
    %v64 = vmax.f32 %v63, %v60
    %v65 = vsub.f32 %v57, %v64
    %v66 = vmul.f32 %v65, 1.442695
    %v67 = vpow.pop %v66
    %v68 = vsub.f32 %v58, %v64
    %v69 = vmul.f32 %v68, 1.442695
    %v70 = vpow.pop %v69
    %v71 = vadd.f32 %v67, %v70
    %v72 = vsub.f32 %v59, %v64
    %v73 = vmul.f32 %v72, 1.442695
    %v74 = vpow.pop %v73
    %v75 = vadd.f32 %v71, %v74
    %v76 = vsub.f32 %v60, %v64
    %v77 = vmul.f32 %v76, 1.442695
    %v78 = vpow.pop %v77
    %v79 = vadd.f32 %v75, %v78
    %v80 = vlog2.pop %v79
    %v81 = vmul.f32 %v80, 0.6931472
    %vm82 = vcmp.eq.s32.totalorder %v61, 1
    %v83 = vsel %vm82, %v58, %v57
    %vm84 = vcmp.gt.f32.partialorder %v58, %v57
    %v85 = vsel %vm84, %v58, %v57
    %v86 = vsel %vm84, 1, 0
    %vm87 = vcmp.eq.s32.totalorder %v61, 2
    %v88 = vsel %vm87, %v59, %v83
    %vm89 = vcmp.gt.f32.partialorder %v59, %v85
    %v90 = vsel %vm89, %v59, %v85
    %v91 = vsel %vm89, 2, %v86
    %vm92 = vcmp.eq.s32.totalorder %v61, 3
    %v93 = vsel %vm92, %v60, %v88
    %vm94 = vcmp.gt.f32.partialorder %v60, %v90
    %v95 = vsel %vm94, 3, %v91
    %vm96 = vcmp.ne.s32.totalorder %v61, 100
    %vm97 = vcmp.eq.s32.totalorder %v95, %v61
    %vm98 = vmand %vm97, %vm96
    %v99 = vadd.f32 %v81, %v64
    %v100 = vsub.f32 %v99, %v93
    %v101 = vsel %vm96, %v100, 0.0
    %v102 = vsel %vm96, 1.0, 0.0
    %v103 = vsel %vm98, 1.0, 0.0
    %v104 = vld [vmem:[#allocation7] sm:$0xff]
    %v105 = vld [vmem:[#allocation7 + $0x8] sm:$0xff]
    %v106 = vld [vmem:[%s3] sm:$0xff]
    %v107 = vmax.f32 %v104, %v105
    %v108 = vmin.f32 %v104, %v105
    %v109 = vsub.f32 %v108, %v107
    %v110 = vmul.f32 %v109, 1.442695
    %v111 = vpow.pop %v110
    %v112 = vadd.f32 %v111, 1.0
    %v113 = vlog2.pop %v112
    %v114 = vmul.f32 %v113, 0.6931472
    %vm115 = vcmp.eq.s32.totalorder %v106, 1
    %v116 = vsel %vm115, %v105, %v104
    %vm117 = vcmp.gt.f32.partialorder %v105, %v104
    %v118 = vsel %vm117, 1, 0
    %vm119 = vcmp.ne.s32.totalorder %v106, 100
    %vm120 = vcmp.eq.s32.totalorder %v118, %v106
    %vm121 = vmand %vm120, %vm119
    %v122 = vadd.f32 %v114, %v107
    %v123 = vsub.f32 %v122, %v116
    %v124 = vsel %vm119, %v123, 0.0
    %v125 = vsel %vm119, 1.0, 0.0
    %v126 = vsel %vm121, 1.0, 0.0
    %v127 = vrot.slane %v101, 4
    %v128 = vadd.f32 %v101, %v127
    %v129 = vrot.slane %v128, 2
    %v130 = vadd.f32 %v128, %v129
    %v131 = vrot.slane %v130, 1
    %v132 = vadd.f32 %v130, %v131
    %v133 = vrot.slane %v102, 4
    %v134 = vadd.f32 %v102, %v133
    %v135 = vrot.slane %v134, 2
    %v136 = vadd.f32 %v134, %v135
    %v137 = vrot.slane %v136, 1
    %v138 = vadd.f32 %v136, %v137
    %v139 = vrot.slane %v103, 4
    %v140 = vadd.f32 %v103, %v139
    %v141 = vrot.slane %v140, 2
    %v142 = vadd.f32 %v140, %v141
    %v143 = vrot.slane %v142, 1
    %v144 = vadd.f32 %v142, %v143
    %v145 = vrot.slane %v124, 4
    %v146 = vadd.f32 %v124, %v145
    %v147 = vrot.slane %v146, 2
    %v148 = vadd.f32 %v146, %v147
    %v149 = vrot.slane %v148, 1
    %v150 = vadd.f32 %v148, %v149
    %v151 = vrot.slane %v125, 4
    %v152 = vadd.f32 %v125, %v151
    %v153 = vrot.slane %v152, 2
    %v154 = vadd.f32 %v152, %v153
    %v155 = vrot.slane %v154, 1
    %v156 = vadd.f32 %v154, %v155
    %v157 = vrot.slane %v126, 4
    %v158 = vadd.f32 %v126, %v157
    %v159 = vrot.slane %v158, 2
    %v160 = vadd.f32 %v158, %v159
    %v161 = vrot.slane %v160, 1
    %v162 = vadd.f32 %v160, %v161
    %vm163 = vcmask 1040384
    %v164 = vsel %vm163, %v132, %v138
    %vm165 = vcmask 1041408
    %v166 = vsel %vm165, %v164, %v144
    %vm167 = vcmask 1042432
    %v168 = vsel %vm167, %v166, %v150
    %vm169 = vcmask 1043456
    %v170 = vsel %vm169, %v168, %v156
    %vm171 = vcmask 1044480
    %v172 = vsel %vm171, %v170, %v162
    %vm173 = vcmask 1045504
    %v174 = vsel %vm173, %v172, 0.0
    %vm175 = vcmask 1046528
    %v176 = vsel %vm175, %v174, 0.0
    %177 = vst [vmem:[#allocation8] sm:$0xff] %v176
    // Predicated region
    $region30: #{tpu_custom_call.1} parent=1 // pred_check
      _
    $region31: #{tpu_custom_call.1} parent=1 // pred_check_branch
      %179 = sbr.rel (0) target = $region33
    $region32: #{tpu_custom_call.1} parent=1 // pred_region
      %s181 = ssub.s32 128, 128
      %182 = vsyncadd [#allocation4], %s181
      %s184 = sshll.u32 [#allocation8], 4
      %s185 = int_to_ptr.vmem [resolvable:$true] %s184
      %187 = dma.vmem_to_hbm [thread:$0]  %s185, 128, %s4, [#allocation4]
    $region33: #{tpu_custom_call.1} parent=1 // pred_fallthru
      _
    // Predicated region
    $region34: #{tpu_custom_call.1} parent=1 // pred_check
      _
    $region35: #{tpu_custom_call.1} parent=1 // pred_check_branch
      %189 = sbr.rel (0) target = $region37
    $region36: #{tpu_custom_call.1} parent=1 // pred_region
      %190 = dma.done [#allocation4], 128
    $region37: #{tpu_custom_call.1} parent=1 // pred_fallthru
      _
    %191 = vsyncpa [#allocation3], 1
    %192 = vsyncpa [#allocation6], 1
    %193 = vsyncpa [#allocation4], 1

</llo_original>
